<compile_context>
chip_gen: v7x
topology: tpu7x:2x2x1
jax: 0.10.0
libtpu: 0.0.40
codegen_flags: <defaults>
</compile_context>

<pallas_src>
import functools

import numpy as np
import jax
import jax.numpy as jnp
from jax.experimental import pallas as pl
from jax.experimental.pallas import tpu as pltpu


# ---------------------------------------------------------------------------
# Host-side helpers: 1-D linear (align_corners=True) interp matrices, BN fold
# ---------------------------------------------------------------------------
@functools.lru_cache(maxsize=None)
def _linear_taps(in_size: int, out_size: int):
    """(i0, i1, frac) per output index for 1-D linear interp, align_corners=True."""
    taps = []
    for i in range(out_size):
        if out_size == 1 or in_size == 1:
            src = 0.0
        else:
            src = i * (in_size - 1) / (out_size - 1)
        i0 = min(max(int(src), 0), in_size - 1)
        i1 = min(i0 + 1, in_size - 1)
        taps.append((i0, i1, float(src - i0)))
    return tuple(taps)


@functools.lru_cache(maxsize=None)
def _interp_matrix(in_size: int, out_size: int) -> np.ndarray:
    """Row-stochastic 1-D linear interpolation matrix (out_size, in_size)."""
    A = np.zeros((out_size, in_size), dtype=np.float32)
    for i, (i0, i1, f) in enumerate(_linear_taps(in_size, out_size)):
        A[i, i0] += 1.0 - f
        A[i, i1] += f
    return A


def fold_bn_into_conv(conv_w, conv_b, bn_w, bn_b, bn_mean, bn_var, eps=1e-5):
    """conv_w: (Cout, Cin) 1x1 weights; returns eval-mode folded (W, b)."""
    scale = bn_w / jnp.sqrt(bn_var + eps)
    return conv_w * scale[:, None], (conv_b - bn_mean) * scale + bn_b


# ---------------------------------------------------------------------------
# Pallas kernel
# ---------------------------------------------------------------------------
def hfe_kernel(x_ref, y_ref, w_ref, b_ref, up_ref, g_ref, o_ref, *, nb, hwx):
    # x_ref/o_ref : (nb, Cout, HWx)      y_ref : (Cin, nb*HWy)  (channel-major)
    # w_ref       : (Cout, Cin)          b_ref : (Cout, 1) f32
    # up_ref      : (nb*HWy, nb*HWx)     g_ref : (1, 1) in SMEM
    # --- folded 1x1 conv + BN + ReLU: one MXU matmul, lane dim = nb*HWy ---
    z = jnp.dot(w_ref[...], y_ref[...], preferred_element_type=jnp.float32)
    z = jnp.maximum(z + b_ref[...], 0.0)                      # (Cout, nb*HWy) f32

    # --- bilinear x2 upsample: one MXU matmul vs kron(I_nb, (A_h (x) A_w)^T) ---
    # (keep z in f32 here if bf16 double-rounding ever becomes a problem)
    up = jnp.dot(z.astype(up_ref.dtype), up_ref[...],
                 preferred_element_type=jnp.float32)          # (Cout, nb*HWx) f32

    # --- fused residual: out = (1+g)*x - g*up, lane-dense per-image stores ---
    g = g_ref[0, 0]
    one_plus_g = 1.0 + g
    for b in range(nb):                       # static unroll; nb is small
        x_b = x_ref[b].astype(jnp.float32)                    # (Cout, HWx)
        up_b = up[:, b * hwx:(b + 1) * hwx]   # aligned slice, HWx % 128 == 0
        o_ref[b] = (one_plus_g * x_b - g * up_b).astype(o_ref.dtype)


# ---------------------------------------------------------------------------
# Wrapper
# ---------------------------------------------------------------------------
def _pick_nb(N, HWy, vmem_bytes_fn, nb=None, vmem_budget=40 * 2**20):
    divisors = [d for d in range(1, N + 1) if N % d == 0]
    if nb is not None:
        nb = max(1, min(int(nb), N))
        while N % nb:
            nb -= 1
    else:
        target = max(1, -(-512 // max(HWy, 1)))              # lane dim >= ~512
        even = [d for d in divisors if (N // d) % 2 == 0]    # even step count (v7x)
        pool = even if even else divisors
        le = [d for d in pool if d <= target]
        nb = max(le) if le else min(pool)
    while nb > 1 and vmem_bytes_fn(nb) > vmem_budget:        # v7x-safe VMEM budget
        nb = max(d for d in divisors if d < nb)
    return nb


def hfe_forward(x, y, w_fold, b_fold, gamma, *, nb=None, mxu_dtype=jnp.bfloat16):
    """x: (N, Cout, Hx, Wx), y: (N, Cin, Hy, Wy) NCHW.  Returns NCHW, dtype of x."""
    N, Cout, Hx, Wx = x.shape
    Ny, Cin, Hy, Wy = y.shape
    assert N == Ny and Hx == 2 * Hy and Wx == 2 * Wy
    HWy, HWx = Hy * Wy, Hx * Wx
    msz = jnp.dtype(mxu_dtype).itemsize
    xsz = x.dtype.itemsize

    def vmem_bytes(nb_):                                     # double-buffered estimate
        xb = nb_ * Cout * HWx * xsz
        yb = Cin * nb_ * HWy * msz
        upm = (nb_ * HWy) * (nb_ * HWx) * msz
        wb = Cout * Cin * msz + 4 * Cout
        return 2 * (2 * xb + yb) + 2 * (upm + wb)

    nb = _pick_nb(N, HWy, vmem_bytes, nb=nb)

    # Constant operands (tiny): folded weights, bias, combined upsample matrix.
    KT = np.kron(_interp_matrix(Hy, Hx), _interp_matrix(Wy, Wx)).T   # (HWy, HWx)
    upm = jnp.asarray(np.kron(np.eye(nb, dtype=np.float32), KT), mxu_dtype)
    w_m = jnp.asarray(w_fold, mxu_dtype)                             # (Cout, Cin)
    b_m = jnp.asarray(b_fold, jnp.float32).reshape(Cout, 1)
    g2 = jnp.asarray(gamma, jnp.float32).reshape(1, 1)

    # y channel-major (small tensor); x / out keep native layout and dtype.
    y_cm = jnp.transpose(y, (1, 0, 2, 3)).reshape(Cin, N * HWy).astype(mxu_dtype)
    x_bm = x.reshape(N, Cout, HWx)                                   # no f32 upcast

    flops = int(2 * N * Cout * Cin * HWy            # conv
                + 2 * N * Cout * nb * HWy * HWx     # upsample matmul (incl. nb pad)
                + 3 * N * Cout * HWx)               # residual
    bytes_accessed = int(2 * xsz * x_bm.size + msz * y_cm.size
                         + msz * (upm.size + w_m.size) + 4 * b_m.size)

    kernel = functools.partial(hfe_kernel, nb=nb, hwx=HWx)
    est = vmem_bytes(nb)

    out = pl.pallas_call(
        kernel,
        out_shape=jax.ShapeDtypeStruct((N, Cout, HWx), x.dtype),
        grid=(N // nb,),
        in_specs=[
            pl.BlockSpec((nb, Cout, HWx), lambda n: (n, 0, 0)),       # x
            pl.BlockSpec((Cin, nb * HWy), lambda n: (0, n)),          # y (C-major)
            pl.BlockSpec((Cout, Cin), lambda n: (0, 0)),              # folded W
            pl.BlockSpec((Cout, 1), lambda n: (0, 0)),                # folded bias
            pl.BlockSpec((nb * HWy, nb * HWx), lambda n: (0, 0)),     # kron(I_nb, K^T)
            pl.BlockSpec((1, 1), lambda n: (0, 0),
                         memory_space=pltpu.SMEM),                    # gamma scalar
        ],
        out_specs=pl.BlockSpec((nb, Cout, HWx), lambda n: (n, 0, 0)),
        compiler_params=pltpu.CompilerParams(
            dimension_semantics=("parallel",),
            vmem_limit_bytes=int(min(64 * 2**20, max(16 * 2**20, 4 * est)))),
        cost_estimate=pl.CostEstimate(flops=flops, transcendentals=0,
                                      bytes_accessed=bytes_accessed),
    )(x_bm, y_cm, w_m, b_m, upm, g2)

    return out.reshape(N, Cout, Hx, Wx)


# ---------------------------------------------------------------------------
# Plain-JAX reference (independent XLA path)
# ---------------------------------------------------------------------------
def hfe_reference(x, y, w_fold, b_fold, gamma):
    N, Cin, Hy, Wy = y.shape
    _, Cout, Hx, Wx = x.shape
    z = jnp.einsum("oc,nchw->nohw", w_fold, y) + b_fold[None, :, None, None]
    z = jnp.maximum(z, 0.0)
    K = np.kron(_interp_matrix(Hy, Hx), _interp_matrix(Wy, Wx))   # (Hx*Wx, Hy*Wy)
    up = (z.reshape(N, Cout, Hy * Wy) @ jnp.asarray(K.T, jnp.float32))
    up = up.reshape(N, Cout, Hx, Wx)
    return x + gamma * (x - up)


if __name__ == "__main__":
    key = jax.random.PRNGKey(0)
    ks = jax.random.split(key, 8)

    # Small shapes consistent with HFE: y is half-resolution of x.
    N, in_ch, out_ch = 4, 6, 4
    Hy = Wy = 8
    Hx, Wx = 2 * Hy, 2 * Wy

    x = jax.random.normal(ks[0], (N, out_ch, Hx, Wx), dtype=jnp.float32)
    y = jax.random.normal(ks[1], (N, in_ch, Hy, Wy), dtype=jnp.float32)

    # Synthetic parameters (shapes from Conv2dBnRelu(in_ch, out_ch, kernel_size=1)).
    conv_w = 0.3 * jax.random.normal(ks[2], (out_ch, in_ch), dtype=jnp.float32)
    conv_b = 0.1 * jax.random.normal(ks[3], (out_ch,), dtype=jnp.float32)
    bn_w = 1.0 + 0.1 * jax.random.normal(ks[4], (out_ch,), dtype=jnp.float32)
    bn_b = 0.1 * jax.random.normal(ks[5], (out_ch,), dtype=jnp.float32)
    bn_mean = 0.1 * jax.random.normal(ks[6], (out_ch,), dtype=jnp.float32)
    bn_var = jnp.abs(jax.random.normal(ks[7], (out_ch,), dtype=jnp.float32)) + 0.5
    gamma = jnp.ones((1,), dtype=jnp.float32)         # nn.Parameter(torch.ones(1))

    w_fold, b_fold = fold_bn_into_conv(conv_w, conv_b, bn_w, bn_b, bn_mean, bn_var)
    ref = hfe_reference(x, y, w_fold, b_fold, gamma[0])

    # f32 MXU operands: tight check.  Auto nb -> 2 (even "parallel" grid of 2).
    out32 = jax.block_until_ready(
        hfe_forward(x, y, w_fold, b_fold, gamma, mxu_dtype=jnp.float32))
    assert out32.shape == (N, out_ch, Hx, Wx) and out32.dtype == x.dtype
    np.testing.assert_allclose(np.asarray(out32), np.asarray(ref),
                               rtol=1e-5, atol=1e-5)

    # Default bf16 MXU operands (f32 accumulation / residual): looser tolerance.
    outbf = jax.block_until_ready(
        hfe_forward(x, y, w_fold, b_fold, gamma, nb=2))
    np.testing.assert_allclose(np.asarray(outbf), np.asarray(ref),
                               rtol=5e-2, atol=1e-1)

    print("KERNEL_OK")
</pallas_src>

<mosaic_0001>
module attributes {stable_mosaic.version = 11 : i64} {
  func.func @hfe_kernel(%arg0: i32, %arg1: memref<2x4x256xf32, #tpu.memory_space<vmem>>, %arg2: memref<6x128xf32, #tpu.memory_space<vmem>>, %arg3: memref<4x6xf32, #tpu.memory_space<vmem>>, %arg4: memref<4x1xf32, #tpu.memory_space<vmem>>, %arg5: memref<128x512xf32, #tpu.memory_space<vmem>>, %arg6: memref<1x1xf32, #tpu.memory_space<smem>>, %arg7: memref<2x4x256xf32, #tpu.memory_space<vmem>>) attributes {dimension_semantics = [#tpu.dimension_semantics<parallel>], iteration_bounds = array<i64: 2>, scalar_prefetch = 0 : i64, scratch_operands = 0 : i64, tpu.core_type = #tpu.core_type<tc>, window_params = [{transform_indices = @transform_0, window_bounds = array<i64: 2, 4, 256>}, {transform_indices = @transform_1, window_bounds = array<i64: 6, 128>}, {pipeline_mode = #tpu.pipeline_mode<synchronous>, transform_indices = @transform_2, window_bounds = array<i64: 4, 6>}, {pipeline_mode = #tpu.pipeline_mode<synchronous>, transform_indices = @transform_3, window_bounds = array<i64: 4, 1>}, {pipeline_mode = #tpu.pipeline_mode<synchronous>, transform_indices = @transform_4, window_bounds = array<i64: 128, 512>}, {transform_indices = @transform_5, window_bounds = array<i64: 1, 1>}, {transform_indices = @transform_6, window_bounds = array<i64: 2, 4, 256>}]} {
    %c0 = arith.constant 0 : index
    %c0_0 = arith.constant 0 : index
    %0 = vector.load %arg3[%c0, %c0_0] : memref<4x6xf32, #tpu.memory_space<vmem>>, vector<4x6xf32>
    %c0_1 = arith.constant 0 : index
    %c0_2 = arith.constant 0 : index
    %1 = vector.load %arg2[%c0_1, %c0_2] : memref<6x128xf32, #tpu.memory_space<vmem>>, vector<6x128xf32>
    %cst = arith.constant dense<0.000000e+00> : vector<4x128xf32>
    %2 = tpu.matmul %0, %1, %cst {dimension_numbers = #tpu.dot_dimension_numbers<[1], [0], [0], [1], [0, 0, 1, 1], [], []>} : vector<4x6xf32>, vector<6x128xf32>, vector<4x128xf32> -> vector<4x128xf32>
    %c0_3 = arith.constant 0 : index
    %c0_4 = arith.constant 0 : index
    %3 = vector.load %arg4[%c0_3, %c0_4] : memref<4x1xf32, #tpu.memory_space<vmem>>, vector<4x1xf32>
    %4 = vector.broadcast %3 : vector<4x1xf32> to vector<4x128xf32>
    %5 = arith.addf %2, %4 : vector<4x128xf32>
    %cst_5 = arith.constant 0.000000e+00 : f32
    %6 = vector.broadcast %cst_5 : f32 to vector<4x128xf32>
    %7 = arith.maximumf %5, %6 : vector<4x128xf32>
    %c0_6 = arith.constant 0 : index
    %c0_7 = arith.constant 0 : index
    %8 = vector.load %arg5[%c0_6, %c0_7] : memref<128x512xf32, #tpu.memory_space<vmem>>, vector<128x512xf32>
    %cst_8 = arith.constant dense<0.000000e+00> : vector<4x512xf32>
    %9 = tpu.matmul %7, %8, %cst_8 {dimension_numbers = #tpu.dot_dimension_numbers<[1], [0], [0], [1], [0, 0, 1, 1], [], []>} : vector<4x128xf32>, vector<128x512xf32>, vector<4x512xf32> -> vector<4x512xf32>
    %c0_9 = arith.constant 0 : index
    %c0_10 = arith.constant 0 : index
    %10 = memref.load %arg6[%c0_9, %c0_10] : memref<1x1xf32, #tpu.memory_space<smem>>
    %cst_11 = arith.constant 1.000000e+00 : f32
    %11 = arith.addf %cst_11, %10 : f32
    %c0_12 = arith.constant 0 : index
    %c0_13 = arith.constant 0 : index
    %c0_14 = arith.constant 0 : index
    %12 = vector.load %arg1[%c0_12, %c0_13, %c0_14] : memref<2x4x256xf32, #tpu.memory_space<vmem>>, vector<1x4x256xf32>
    %13 = vector.shape_cast %12 : vector<1x4x256xf32> to vector<4x256xf32>
    %14 = vector.extract_strided_slice %9 {offsets = [0, 0], sizes = [4, 256], strides = [1, 1]} : vector<4x512xf32> to vector<4x256xf32>
    %15 = vector.broadcast %11 : f32 to vector<4x256xf32>
    %16 = arith.mulf %15, %13 : vector<4x256xf32>
    %17 = vector.broadcast %10 : f32 to vector<4x256xf32>
    %18 = arith.mulf %17, %14 : vector<4x256xf32>
    %19 = arith.subf %16, %18 : vector<4x256xf32>
    %c0_15 = arith.constant 0 : index
    %c0_16 = arith.constant 0 : index
    %c0_17 = arith.constant 0 : index
    %20 = vector.load %arg7[%c0_15, %c0_16, %c0_17] : memref<2x4x256xf32, #tpu.memory_space<vmem>>, vector<1x4x256xf32>
    %21 = vector.shape_cast %20 : vector<1x4x256xf32> to vector<4x256xf32>
    %22 = vector.shape_cast %19 : vector<4x256xf32> to vector<1x4x256xf32>
    tpu.vector_store %arg7[%c0_15, %c0_16, %c0_17], %22 {strides = array<i32>} : memref<2x4x256xf32, #tpu.memory_space<vmem>>, vector<1x4x256xf32>,
    %c1 = arith.constant 1 : index
    %c0_18 = arith.constant 0 : index
    %c0_19 = arith.constant 0 : index
    %23 = vector.load %arg1[%c1, %c0_18, %c0_19] : memref<2x4x256xf32, #tpu.memory_space<vmem>>, vector<1x4x256xf32>
    %24 = vector.shape_cast %23 : vector<1x4x256xf32> to vector<4x256xf32>
    %25 = vector.extract_strided_slice %9 {offsets = [0, 256], sizes = [4, 256], strides = [1, 1]} : vector<4x512xf32> to vector<4x256xf32>
    %26 = vector.broadcast %11 : f32 to vector<4x256xf32>
    %27 = arith.mulf %26, %24 : vector<4x256xf32>
    %28 = vector.broadcast %10 : f32 to vector<4x256xf32>
    %29 = arith.mulf %28, %25 : vector<4x256xf32>
    %30 = arith.subf %27, %29 : vector<4x256xf32>
    %c1_20 = arith.constant 1 : index
    %c0_21 = arith.constant 0 : index
    %c0_22 = arith.constant 0 : index
    %31 = vector.load %arg7[%c1_20, %c0_21, %c0_22] : memref<2x4x256xf32, #tpu.memory_space<vmem>>, vector<1x4x256xf32>
    %32 = vector.shape_cast %31 : vector<1x4x256xf32> to vector<4x256xf32>
    %33 = vector.shape_cast %30 : vector<4x256xf32> to vector<1x4x256xf32>
    tpu.vector_store %arg7[%c1_20, %c0_21, %c0_22], %33 {strides = array<i32>} : memref<2x4x256xf32, #tpu.memory_space<vmem>>, vector<1x4x256xf32>,
    return
  }
  func.func @transform_0(%arg0: i32) -> (i32, i32, i32) {
    %c0_i32 = arith.constant 0 : i32
    %c0_i32_0 = arith.constant 0 : i32
    %c0_i32_1 = arith.constant 0 : i32
    return %arg0, %c0_i32, %c0_i32_0 : i32, i32, i32
  }
  func.func @transform_1(%arg0: i32) -> (i32, i32) {
    %c0_i32 = arith.constant 0 : i32
    %c0_i32_0 = arith.constant 0 : i32
    return %c0_i32, %arg0 : i32, i32
  }
  func.func @transform_2(%arg0: i32) -> (i32, i32) {
    %c0_i32 = arith.constant 0 : i32
    %c0_i32_0 = arith.constant 0 : i32
    %c0_i32_1 = arith.constant 0 : i32
    return %c0_i32, %c0_i32_0 : i32, i32
  }
  func.func @transform_3(%arg0: i32) -> (i32, i32) {
    %c0_i32 = arith.constant 0 : i32
    %c0_i32_0 = arith.constant 0 : i32
    %c0_i32_1 = arith.constant 0 : i32
    return %c0_i32, %c0_i32_0 : i32, i32
  }
  func.func @transform_4(%arg0: i32) -> (i32, i32) {
    %c0_i32 = arith.constant 0 : i32
    %c0_i32_0 = arith.constant 0 : i32
    %c0_i32_1 = arith.constant 0 : i32
    return %c0_i32, %c0_i32_0 : i32, i32
  }
  func.func @transform_5(%arg0: i32) -> (i32, i32) {
    %c0_i32 = arith.constant 0 : i32
    %c0_i32_0 = arith.constant 0 : i32
    %c0_i32_1 = arith.constant 0 : i32
    return %c0_i32, %c0_i32_0 : i32, i32
  }
  func.func @transform_6(%arg0: i32) -> (i32, i32, i32) {
    %c0_i32 = arith.constant 0 : i32
    %c0_i32_0 = arith.constant 0 : i32
    %c0_i32_1 = arith.constant 0 : i32
    return %arg0, %c0_i32, %c0_i32_0 : i32, i32, i32
  }
}

</mosaic_0001>

<llo_original>
// kernel: tpu_custom_call.1
$region0: #{tpu_custom_call.1}
  #allocation0 [shape = 'u32[]', space=smem, size = 0x4, offset = 0x4, fixed_abs, tag = 'smem constant byte address 0x4 - core index']
  #allocation1 [shape = 'u32[144,128]{1,0:T(1,128)}', space=vmem, size = 0x12000, scoped, tag = 'internal scratch']
  #allocation2 [shape = 'f32[1,1]{1,0:T(1,128)S(6)}', space=smem, size = 0x200, scoped, tag = 'scoped memory for tpu_custom_call.1']
  %s0 = inlined_call_operand.hbm [shape: f32[4,4,256], index: 0, kind: input, shape index: {}]
  %s1 = inlined_call_operand.hbm [shape: f32[6,256], index: 1, kind: input, shape index: {}]
  %s2 = inlined_call_operand.vmem [shape: f32[4,6], index: 2, kind: input, shape index: {}]
  %s3 = inlined_call_operand.vmem [shape: f32[4,1], index: 3, kind: input, shape index: {}]
  %s4 = inlined_call_operand.hbm [shape: f32[128,512], index: 4, kind: input, shape index: {}]
  %s5 = inlined_call_operand.<no memory space> [shape: f32[1,1], index: 5, kind: input, shape index: {}]
  %s6 = inlined_call_operand.hbm [shape: f32[4,4,256], index: 6, kind: output, shape index: {}]
  %s7 = sld [smem:[#allocation0]]
  $region69: #{tpu_custom_call.1} parent=0
    _
  %s9 = ssub.s32 1, %s7
  %s10 = scalar_select 0, %s9, %s7
  %11 = sst [smem:[#allocation2]] %s5
  $region1: #{tpu_custom_call.1} parent=0
    #allocation3 [shape = 'u8[16384]{0}', space=vmem, size = 0x4000, scoped, tag = 'input window, operand 0']
    #allocation4 [shape = 's32[2]{0}', space=sflag, size = 0x8, scoped, tag = 'scoped memory for tpu_custom_call.1']
    #allocation5 [shape = 's32[2]{0}', space=sflag, size = 0x8, scoped, tag = 'scoped memory for tpu_custom_call.1']
    #allocation6 [shape = 'u8[8192]{0}', space=vmem, size = 0x2000, scoped, tag = 'input window, operand 1']
    #allocation7 [shape = 's32[2]{0}', space=sflag, size = 0x8, scoped, tag = 'scoped memory for tpu_custom_call.1']
    #allocation8 [shape = 'u8[262144]{0}', space=vmem, size = 0x40000, scoped, tag = 'input window, operand 4, single buffered']
    #allocation9 [shape = 'u8[16384]{0}', space=vmem, size = 0x4000, scoped, tag = 'output window, operand 0']
    %12 = vsyncpa [#allocation4], 0
    %s13 = scalar_lea.sflag [#allocation4], 1
    %14 = vsyncpa %s13, 0
    %15 = vsyncpa [#allocation7], 0
    %s16 = scalar_lea.sflag [#allocation7], 1
    %17 = vsyncpa %s16, 0
    %18 = vsyncpa [#allocation5], 0
    %s19 = scalar_lea.sflag [#allocation5], 1
    %20 = vsyncpa %s19, 0
    loop: start=0, step=1, limit=4
    $region2: #{tpu_custom_call.1} parent=1 // loop_pre_header
      _
    $region3: #{tpu_custom_call.1} parent=1 // loop_header
      %s22 = sphi 0, %s26
      %p23 = scmp.ge.s32.totalorder %s22, 4
      %s32 = sphi 0, %s34
      %s35 = sphi 0, %s32
      %s36 = sphi 0, %s35
      %s52 = sphi 0, %s36
      %s58 = sphi 0, %s60
      %s61 = sphi 0, %s58
      %s62 = sphi 0, %s61
      %s78 = sphi 0, %s62
      %s82 = sphi 0, %s82
      %s84 = sphi 0, %s82
      %s85 = sphi 0, %s84
      %s99 = sphi 0, %s85
      %s103 = sphi 0, %s103
      %s105 = sphi 0, %s103
      %s106 = sphi 0, %s105
      %s120 = sphi 0, %s106
      %s124 = sphi 0, %s124
      %s126 = sphi 0, %s124
      %s127 = sphi 0, %s126
      %s141 = sphi 0, %s127
      %s145 = sphi 0, %s145
      %s147 = sphi 0, %s145
      %s148 = sphi 0, %s147
      %s162 = sphi 0, %s148
      %s168 = sphi 0, %s170
      %s171 = sphi 0, %s168
      %s172 = sphi 0, %s171
      %s188 = sphi 0, %s172
    $region4: #{tpu_custom_call.1} parent=1 // loop_header_branch
      %25 = sbr.rel (%p23) target = $region8
    $region5: #{tpu_custom_call.1} parent=1 // loop_body
      %s27 = ssub.s32 %s22, 1
      %s28 = ssub.s32 %s22, 2
      %s29 = sadd.s32 %s22, 1
      %s30 = ssub.s32 %s22, %s29
      %p31 = scmp.eq.s32.totalorder %s30, 0
      %s33 = sadd.s32 %s32, 1
      %s34 = scalar_select %p31, %s32, %s33
      %p37 = pneg %p31
      %p38 = scmp.eq.s32.totalorder %s22, 1
      %p39 = por %p37, %p38
      %p40 = scmp.ne.s32.totalorder %s32, %s35
      %p41 = scmp.eq.s32.totalorder %s22, 0
      %p42 = por %p40, %p41
      %p43 = scmp.ne.s32.totalorder %s32, %s35
      %p44 = scmp.eq.s32.totalorder %s27, 1
      %p45 = por %p43, %p44
      %p46 = scmp.ne.s32.totalorder %s35, %s36
      %p47 = scmp.eq.s32.totalorder %s27, 0
      %p48 = por %p46, %p47
      %p49 = scmp.ne.s32.totalorder %s35, %s36
      %p50 = scmp.eq.s32.totalorder %s28, 1
      %p51 = por %p49, %p50
      %p53 = scmp.ne.s32.totalorder %s36, %s52
      %p54 = scmp.eq.s32.totalorder %s28, 0
      %p55 = por %p53, %p54
      %s56 = ssub.s32 %s22, %s29
      %p57 = scmp.eq.s32.totalorder %s56, 0
      %s59 = sadd.s32 %s58, 1
      %s60 = scalar_select %p57, %s58, %s59
      %p63 = pneg %p57
      %p64 = scmp.eq.s32.totalorder %s22, 1
      %p65 = por %p63, %p64
      %p66 = scmp.ne.s32.totalorder %s58, %s61
      %p67 = scmp.eq.s32.totalorder %s22, 0
      %p68 = por %p66, %p67
      %p69 = scmp.ne.s32.totalorder %s58, %s61
      %p70 = scmp.eq.s32.totalorder %s27, 1
      %p71 = por %p69, %p70
      %p72 = scmp.ne.s32.totalorder %s61, %s62
      %p73 = scmp.eq.s32.totalorder %s27, 0
      %p74 = por %p72, %p73
      %p75 = scmp.ne.s32.totalorder %s61, %s62
      %p76 = scmp.eq.s32.totalorder %s28, 1
      %p77 = por %p75, %p76
      %p79 = scmp.ne.s32.totalorder %s62, %s78
      %p80 = scmp.eq.s32.totalorder %s28, 0
      %p81 = por %p79, %p80
      %s83 = sadd.s32 %s82, 1
      %p86 = scmp.eq.s32.totalorder %s22, 1
      %p87 = scmp.ne.s32.totalorder %s82, %s84
      %p88 = scmp.eq.s32.totalorder %s22, 0
      %p89 = por %p87, %p88
      %p90 = scmp.ne.s32.totalorder %s82, %s84
      %p91 = scmp.eq.s32.totalorder %s27, 1
      %p92 = por %p90, %p91
      %p93 = scmp.ne.s32.totalorder %s84, %s85
      %p94 = scmp.eq.s32.totalorder %s27, 0
      %p95 = por %p93, %p94
      %p96 = scmp.ne.s32.totalorder %s84, %s85
      %p97 = scmp.eq.s32.totalorder %s28, 1
      %p98 = por %p96, %p97
      %p100 = scmp.ne.s32.totalorder %s85, %s99
      %p101 = scmp.eq.s32.totalorder %s28, 0
      %p102 = por %p100, %p101
      %s104 = sadd.s32 %s103, 1
      %p107 = scmp.eq.s32.totalorder %s22, 1
      %p108 = scmp.ne.s32.totalorder %s103, %s105
      %p109 = scmp.eq.s32.totalorder %s22, 0
      %p110 = por %p108, %p109
      %p111 = scmp.ne.s32.totalorder %s103, %s105
      %p112 = scmp.eq.s32.totalorder %s27, 1
      %p113 = por %p111, %p112
      %p114 = scmp.ne.s32.totalorder %s105, %s106
      %p115 = scmp.eq.s32.totalorder %s27, 0
      %p116 = por %p114, %p115
      %p117 = scmp.ne.s32.totalorder %s105, %s106
      %p118 = scmp.eq.s32.totalorder %s28, 1
      %p119 = por %p117, %p118
      %p121 = scmp.ne.s32.totalorder %s106, %s120
      %p122 = scmp.eq.s32.totalorder %s28, 0
      %p123 = por %p121, %p122
      %s125 = sadd.s32 %s124, 1
      %p128 = scmp.eq.s32.totalorder %s22, 1
      %p129 = scmp.ne.s32.totalorder %s124, %s126
      %p130 = scmp.eq.s32.totalorder %s22, 0
      %p131 = por %p129, %p130
      %p132 = scmp.ne.s32.totalorder %s124, %s126
      %p133 = scmp.eq.s32.totalorder %s27, 1
      %p134 = por %p132, %p133
      %p135 = scmp.ne.s32.totalorder %s126, %s127
      %p136 = scmp.eq.s32.totalorder %s27, 0
      %p137 = por %p135, %p136
      %p138 = scmp.ne.s32.totalorder %s126, %s127
      %p139 = scmp.eq.s32.totalorder %s28, 1
      %p140 = por %p138, %p139
      %p142 = scmp.ne.s32.totalorder %s127, %s141
      %p143 = scmp.eq.s32.totalorder %s28, 0
      %p144 = por %p142, %p143
      %s146 = sadd.s32 %s145, 1
      %p149 = scmp.eq.s32.totalorder %s22, 1
      %p150 = scmp.ne.s32.totalorder %s145, %s147
      %p151 = scmp.eq.s32.totalorder %s22, 0
      %p152 = por %p150, %p151
      %p153 = scmp.ne.s32.totalorder %s145, %s147
      %p154 = scmp.eq.s32.totalorder %s27, 1
      %p155 = por %p153, %p154
      %p156 = scmp.ne.s32.totalorder %s147, %s148
      %p157 = scmp.eq.s32.totalorder %s27, 0
      %p158 = por %p156, %p157
      %p159 = scmp.ne.s32.totalorder %s147, %s148
      %p160 = scmp.eq.s32.totalorder %s28, 1
      %p161 = por %p159, %p160
      %p163 = scmp.ne.s32.totalorder %s148, %s162
      %p164 = scmp.eq.s32.totalorder %s28, 0
      %p165 = por %p163, %p164
      %s166 = ssub.s32 %s22, %s29
      %p167 = scmp.eq.s32.totalorder %s166, 0
      %s169 = sadd.s32 %s168, 1
      %s170 = scalar_select %p167, %s168, %s169
      %p173 = pneg %p167
      %p174 = scmp.eq.s32.totalorder %s22, 1
      %p175 = por %p173, %p174
      %p176 = scmp.ne.s32.totalorder %s168, %s171
      %p177 = scmp.eq.s32.totalorder %s22, 0
      %p178 = por %p176, %p177
      %p179 = scmp.ne.s32.totalorder %s168, %s171
      %p180 = scmp.eq.s32.totalorder %s27, 1
      %p181 = por %p179, %p180
      %p182 = scmp.ne.s32.totalorder %s171, %s172
      %p183 = scmp.eq.s32.totalorder %s27, 0
      %p184 = por %p182, %p183
      %p185 = scmp.ne.s32.totalorder %s171, %s172
      %p186 = scmp.eq.s32.totalorder %s28, 1
      %p187 = por %p185, %p186
      %p189 = scmp.ne.s32.totalorder %s172, %s188
      %p190 = scmp.eq.s32.totalorder %s28, 0
      %p191 = por %p189, %p190
      %p192 = scmp.le.s32.totalorder 1, %s22
      %p193 = scmp.lt.s32.totalorder %s22, 3
      %p194 = pnand %p192, %p193
      %p195 = pneg %p194
      // Predicated region
      $region9: #{tpu_custom_call.1} parent=5 // pred_check
        _
      $region10: #{tpu_custom_call.1} parent=5 // pred_check_branch
        %197 = sbr.rel (%p194) target = $region12
      $region11: #{tpu_custom_call.1} parent=5 // pred_region
        %s198 = ssub.s32 %s22, 1
        // Predicated region
        $region13: #{tpu_custom_call.1} parent=11 // pred_check
          %p199 = pneg %p95
        $region14: #{tpu_custom_call.1} parent=11 // pred_check_branch
          %201 = sbr.rel (%p199) target = $region16
        $region15: #{tpu_custom_call.1} parent=11 // pred_region
          _
        $region16: #{tpu_custom_call.1} parent=11 // pred_fallthru
          _
        // Predicated region
        $region17: #{tpu_custom_call.1} parent=11 // pred_check
          %p202 = pneg %p116
        $region18: #{tpu_custom_call.1} parent=11 // pred_check_branch
          %204 = sbr.rel (%p202) target = $region20
        $region19: #{tpu_custom_call.1} parent=11 // pred_region
          _
        $region20: #{tpu_custom_call.1} parent=11 // pred_fallthru
          _
        // Predicated region
        $region21: #{tpu_custom_call.1} parent=11 // pred_check
          %p205 = pneg %p137
        $region22: #{tpu_custom_call.1} parent=11 // pred_check_branch
          %207 = sbr.rel (%p205) target = $region24
        $region23: #{tpu_custom_call.1} parent=11 // pred_region
          %s209 = ssub.s32 8192, 8192
          %210 = vsyncadd [#allocation7], %s209
          %s211 = sshll.u32 [#allocation8], 4
          %s212 = int_to_ptr.vmem [resolvable:$true] %s211
          %217 = dma.hbm_to_vmem [thread:$0]  %s4, 8192, %s212, [#allocation7], 512, 512, 32
        $region24: #{tpu_custom_call.1} parent=11 // pred_fallthru
          _
        // Predicated region
        $region25: #{tpu_custom_call.1} parent=11 // pred_check
          %p218 = pneg %p158
        $region26: #{tpu_custom_call.1} parent=11 // pred_check_branch
          %220 = sbr.rel (%p218) target = $region28
        $region27: #{tpu_custom_call.1} parent=11 // pred_region
          _
        $region28: #{tpu_custom_call.1} parent=11 // pred_fallthru
          _
      $region12: #{tpu_custom_call.1} parent=5 // pred_fallthru
        _
      %p221 = scmp.lt.s32.totalorder %s22, 2
      // Predicated region
      $region29: #{tpu_custom_call.1} parent=5 // pred_check
        %p222 = pneg %p221
      $region30: #{tpu_custom_call.1} parent=5 // pred_check_branch
        %224 = sbr.rel (%p222) target = $region32
      $region31: #{tpu_custom_call.1} parent=5 // pred_region
        // Predicated region
        $region33: #{tpu_custom_call.1} parent=31 // pred_check
          %p225 = pneg %p42
        $region34: #{tpu_custom_call.1} parent=31 // pred_check_branch
          %227 = sbr.rel (%p225) target = $region36
        $region35: #{tpu_custom_call.1} parent=31 // pred_region
          %s228 = sand.u32 %s32, 1
          %s229 = scalar_lea.sflag [#allocation4], %s228
          %s230 = sand.u32 %s32, 1
          %s231 = smul.addr %s230, 16
          %s232 = scalar_lea.vmem [#allocation3], %s231
          %s233 = smul.u32 2, %s22
          %s235 = ssub.s32 256, 256
          %236 = vsyncadd %s229, %s235
          %s237 = smul.addr %s233, 2
          %s238 = smul.addr %s237, 64
          %s239 = scalar_lea.hbm %s0, %s238
          %s240 = sshll.u32 %s232, 4
          %s241 = int_to_ptr.vmem [resolvable:$true] %s240
          %246 = dma.hbm_to_vmem [thread:$0]  %s239, 256, %s241, %s229, 128, 128, 8
        $region36: #{tpu_custom_call.1} parent=31 // pred_fallthru
          _
        // Predicated region
        $region37: #{tpu_custom_call.1} parent=31 // pred_check
          %p247 = pneg %p68
        $region38: #{tpu_custom_call.1} parent=31 // pred_check_branch
          %249 = sbr.rel (%p247) target = $region40
        $region39: #{tpu_custom_call.1} parent=31 // pred_region
          %s250 = sand.u32 %s22, 1
          %s251 = scalar_lea.sflag [#allocation7], %s250
          %s252 = sand.u32 %s58, 1
          %s253 = smul.addr %s252, 8
          %s254 = scalar_lea.vmem [#allocation6], %s253
          %s256 = ssub.s32 128, 128
          %257 = vsyncadd %s251, %s256
          %s258 = smul.addr %s22, 128
          %s259 = scalar_lea.hbm %s1, %s258
          %s261 = sshll.u32 %s254, 4
          %s262 = int_to_ptr.vmem [resolvable:$true] %s261
          %264 = dma.hbm_to_vmem [thread:$0]  %s259, 128, %s262, %s251
        $region40: #{tpu_custom_call.1} parent=31 // pred_fallthru
          _
      $region32: #{tpu_custom_call.1} parent=5 // pred_fallthru
        _
      %p265 = scmp.le.s32.totalorder 1, %s22
      %p266 = scmp.lt.s32.totalorder %s22, 3
      %p267 = pnand %p265, %p266
      %p268 = pneg %p267
      // Predicated region
      $region41: #{tpu_custom_call.1} parent=5 // pred_check
        _
      $region42: #{tpu_custom_call.1} parent=5 // pred_check_branch
        %270 = sbr.rel (%p267) target = $region44
      $region43: #{tpu_custom_call.1} parent=5 // pred_region
        %s271 = ssub.s32 %s22, 1
        %s272 = sand.u32 %s35, 1
        %s273 = scalar_lea.sflag [#allocation4], %s272
        %s274 = sand.u32 %s35, 1
        %s275 = smul.addr %s274, 16
        %s276 = scalar_lea.vmem [#allocation3], %s275
        // Predicated region
        $region45: #{tpu_custom_call.1} parent=43 // pred_check
          %p277 = pneg %p48
        $region46: #{tpu_custom_call.1} parent=43 // pred_check_branch
          %279 = sbr.rel (%p277) target = $region48
        $region47: #{tpu_custom_call.1} parent=43 // pred_region
          %280 = dma.done %s273, 256
        $region48: #{tpu_custom_call.1} parent=43 // pred_fallthru
          _
        %s281 = sand.u32 %s27, 1
        %s282 = scalar_lea.sflag [#allocation7], %s281
        %s283 = sand.u32 %s61, 1
        %s284 = smul.addr %s283, 8
        %s285 = scalar_lea.vmem [#allocation6], %s284
        // Predicated region
        $region49: #{tpu_custom_call.1} parent=43 // pred_check
          %p286 = pneg %p74
        $region50: #{tpu_custom_call.1} parent=43 // pred_check_branch
          %288 = sbr.rel (%p286) target = $region52
        $region51: #{tpu_custom_call.1} parent=43 // pred_region
          %289 = dma.done %s282, 128
        $region52: #{tpu_custom_call.1} parent=43 // pred_fallthru
          _
        // Predicated region
        $region53: #{tpu_custom_call.1} parent=43 // pred_check
          %p290 = pneg %p137
        $region54: #{tpu_custom_call.1} parent=43 // pred_check_branch
          %292 = sbr.rel (%p290) target = $region56
        $region55: #{tpu_custom_call.1} parent=43 // pred_region
          %293 = dma.done [#allocation7], 8192
        $region56: #{tpu_custom_call.1} parent=43 // pred_fallthru
          _
        %s294 = sand.u32 %s35, 1
        %s295 = scalar_lea.sflag [#allocation4], %s294
        %s296 = sand.u32 %s35, 1
        %s297 = smul.addr %s296, 16
        %s298 = scalar_lea.vmem [#allocation3], %s297
        %p299 = pneg %p48
        %p300 = pneg %p45
        %s301 = sand.u32 %s27, 1
        %s302 = scalar_lea.sflag [#allocation7], %s301
        %s303 = sand.u32 %s61, 1
        %s304 = smul.addr %s303, 8
        %s305 = scalar_lea.vmem [#allocation6], %s304
        %p306 = pneg %p74
        %p307 = pneg %p71
        %p308 = pneg %p95
        %p309 = pneg %p92
        %p310 = pneg %p116
        %p311 = pneg %p113
        %p312 = pneg %p137
        %p313 = pneg %p134
        %p314 = pneg %p158
        %p315 = pneg %p155
        %p316 = pneg %p184
        %p317 = pneg %p181
        %s318 = sand.u32 %s171, 1
        %s319 = scalar_lea.sflag [#allocation5], %s318
        %s320 = sand.u32 %s171, 1
        %s321 = smul.addr %s320, 16
        %s322 = scalar_lea.vmem [#allocation9], %s321
        %s323 = smul.u32 2, %s27
        %s324 = smul.u32 2, %s27
        %v325 = vld [vmem:[%s2] sm:$0xf]
        %v326 = vld [vmem:[%s285] sm:$0x3f]
        %v327 = vld [vmem:[%s3] sm:$0xf]
        %329 = vset.pattern.permute.xlu0 0
        %330 = vperm.xlu0 %329, %v327
        %v331 = vpop.permute.xlu0 %330
        %vm333 = vcmask 48128
        %v335 = vsel %vm333, %v325, 0
        %vm337 = vcmask 1045504
        %v339 = vsel %vm337, %v326, 0
        %341 = vmatprep.subr.mxu0 0.0
        %342 = vmatpush1.msra.mxu0 %v339
        %343 = vmatprep.subr.mxu0 0.0
        %344 = vmatpush1.msra.mxu0 0.0
        %345 = vmatprep.subr.mxu0 0.0
        %346 = vmatpush1.msra.mxu0 0.0
        %347 = vmatprep.subr.mxu0 0.0
        %348 = vmatpush1.msra.mxu0 0.0
        %349 = vmatprep.subr.mxu0 0.0
        %350 = vmatpush1.msra.mxu0 0.0
        %351 = vmatprep.subr.mxu0 0.0
        %352 = vmatpush1.msra.mxu0 0.0
        %353 = vmatprep.subr.mxu0 0.0
        %354 = vmatpush1.msra.mxu0 0.0
        %355 = vmatprep.subr.mxu0 0.0
        %356 = vmatpush1.msra.mxu0 0.0
        %357 = vmatprep.subr.mxu0 0.0
        %358 = vmatpush1.msra.mxu0 0.0
        %359 = vmatprep.subr.mxu0 0.0
        %360 = vmatpush1.msra.mxu0 0.0
        %361 = vmatprep.subr.mxu0 0.0
        %362 = vmatpush1.msra.mxu0 0.0
        %363 = vmatprep.subr.mxu0 0.0
        %364 = vmatpush1.msra.mxu0 0.0
        %365 = vmatprep.subr.mxu0 0.0
        %366 = vmatpush1.msra.mxu0 0.0
        %367 = vmatprep.subr.mxu0 0.0
        %368 = vmatpush1.msra.mxu0 0.0
        %369 = vmatprep.subr.mxu0 0.0
        %370 = vmatpush1.msra.mxu0 0.0
        %371 = vmatprep.subr.mxu0 0.0
        %372 = vmatpush1.msra.mxu0 0.0
        %373 = vmatprep.subr.mxu0 0.0
        %374 = vmatpush1.msra.mxu0 0.0
        %375 = vmatprep.subr.mxu0 0.0
        %376 = vmatpush1.msra.mxu0 0.0
        %377 = vmatprep.subr.mxu0 0.0
        %378 = vmatpush1.msra.mxu0 0.0
        %379 = vmatprep.subr.mxu0 0.0
        %380 = vmatpush1.msra.mxu0 0.0
        %381 = vmatprep.subr.mxu0 0.0
        %382 = vmatpush1.msra.mxu0 0.0
        %383 = vmatprep.subr.mxu0 0.0
        %384 = vmatpush1.msra.mxu0 0.0
        %385 = vmatprep.subr.mxu0 0.0
        %386 = vmatpush1.msra.mxu0 0.0
        %387 = vmatprep.subr.mxu0 0.0
        %388 = vmatpush1.msra.mxu0 0.0
        %389 = vmatprep.subr.mxu0 0.0
        %390 = vmatpush1.msra.mxu0 0.0
        %391 = vmatprep.subr.mxu0 0.0
        %392 = vmatpush1.msra.mxu0 0.0
        %393 = vmatprep.subr.mxu0 0.0
        %394 = vmatpush1.msra.mxu0 0.0
        %395 = vmatprep.subr.mxu0 0.0
        %396 = vmatpush1.msra.mxu0 0.0
        %397 = vmatprep.subr.mxu0 0.0
        %398 = vmatpush1.msra.mxu0 0.0
        %399 = vmatprep.subr.mxu0 0.0
        %400 = vmatpush1.msra.mxu0 0.0
        %401 = vmatprep.subr.mxu0 0.0
        %402 = vmatpush1.msra.mxu0 0.0
        %403 = vmatprep.subr.mxu0 0.0
        %404 = vmatpush1.msra.mxu0 0.0
        %405 = vmatprep.mubr.f32.mxu0 0.0
        %406 = vmatmul.mubr.f32.gmra.mrb[0].mxu0 %v335
        %v407 = vpop.f32.mrb[0].mxu0
        %v408 = vadd.f32 %v331, %v407
        %v409 = vpop.f32.mrb[0].mxu0
        %410 = vdwg.mxu0
        %v411 = vmax.f32 %v408, 0.0
        %v412 = vld [vmem:[#allocation8] sm:$0xff]
        %v413 = vld [vmem:[#allocation8 + $0x8] sm:$0xff]
        %v414 = vld [vmem:[#allocation8 + $0x10] sm:$0xff]
        %v415 = vld [vmem:[#allocation8 + $0x18] sm:$0xff]
        %v416 = vld [vmem:[#allocation8 + $0x20] sm:$0xff]
        %v417 = vld [vmem:[#allocation8 + $0x28] sm:$0xff]
        %v418 = vld [vmem:[#allocation8 + $0x30] sm:$0xff]
        %v419 = vld [vmem:[#allocation8 + $0x38] sm:$0xff]
        %v420 = vld [vmem:[#allocation8 + $0x40] sm:$0xff]
        %v421 = vld [vmem:[#allocation8 + $0x48] sm:$0xff]
        %v422 = vld [vmem:[#allocation8 + $0x50] sm:$0xff]
        %v423 = vld [vmem:[#allocation8 + $0x58] sm:$0xff]
        %v424 = vld [vmem:[#allocation8 + $0x60] sm:$0xff]
        %v425 = vld [vmem:[#allocation8 + $0x68] sm:$0xff]
        %v426 = vld [vmem:[#allocation8 + $0x70] sm:$0xff]
        %v427 = vld [vmem:[#allocation8 + $0x78] sm:$0xff]
        %v428 = vld [vmem:[#allocation8 + $0x80] sm:$0xff]
        %v429 = vld [vmem:[#allocation8 + $0x88] sm:$0xff]
        %v430 = vld [vmem:[#allocation8 + $0x90] sm:$0xff]
        %v431 = vld [vmem:[#allocation8 + $0x98] sm:$0xff]
        %v432 = vld [vmem:[#allocation8 + $0xa0] sm:$0xff]
        %v433 = vld [vmem:[#allocation8 + $0xa8] sm:$0xff]
        %v434 = vld [vmem:[#allocation8 + $0xb0] sm:$0xff]
        %v435 = vld [vmem:[#allocation8 + $0xb8] sm:$0xff]
        %v436 = vld [vmem:[#allocation8 + $0xc0] sm:$0xff]
        %v437 = vld [vmem:[#allocation8 + $0xc8] sm:$0xff]
        %v438 = vld [vmem:[#allocation8 + $0xd0] sm:$0xff]
        %v439 = vld [vmem:[#allocation8 + $0xd8] sm:$0xff]
        %v440 = vld [vmem:[#allocation8 + $0xe0] sm:$0xff]
        %v441 = vld [vmem:[#allocation8 + $0xe8] sm:$0xff]
        %v442 = vld [vmem:[#allocation8 + $0xf0] sm:$0xff]
        %v443 = vld [vmem:[#allocation8 + $0xf8] sm:$0xff]
        %v444 = vld [vmem:[#allocation8 + $0x100] sm:$0xff]
        %v445 = vld [vmem:[#allocation8 + $0x108] sm:$0xff]
        %v446 = vld [vmem:[#allocation8 + $0x110] sm:$0xff]
        %v447 = vld [vmem:[#allocation8 + $0x118] sm:$0xff]
        %v448 = vld [vmem:[#allocation8 + $0x120] sm:$0xff]
        %v449 = vld [vmem:[#allocation8 + $0x128] sm:$0xff]
        %v450 = vld [vmem:[#allocation8 + $0x130] sm:$0xff]
        %v451 = vld [vmem:[#allocation8 + $0x138] sm:$0xff]
        %v452 = vld [vmem:[#allocation8 + $0x140] sm:$0xff]
        %v453 = vld [vmem:[#allocation8 + $0x148] sm:$0xff]
        %v454 = vld [vmem:[#allocation8 + $0x150] sm:$0xff]
        %v455 = vld [vmem:[#allocation8 + $0x158] sm:$0xff]
        %v456 = vld [vmem:[#allocation8 + $0x160] sm:$0xff]
        %v457 = vld [vmem:[#allocation8 + $0x168] sm:$0xff]
        %v458 = vld [vmem:[#allocation8 + $0x170] sm:$0xff]
        %v459 = vld [vmem:[#allocation8 + $0x178] sm:$0xff]
        %v460 = vld [vmem:[#allocation8 + $0x180] sm:$0xff]
        %v461 = vld [vmem:[#allocation8 + $0x188] sm:$0xff]
        %v462 = vld [vmem:[#allocation8 + $0x190] sm:$0xff]
        %v463 = vld [vmem:[#allocation8 + $0x198] sm:$0xff]
        %v464 = vld [vmem:[#allocation8 + $0x1a0] sm:$0xff]
        %v465 = vld [vmem:[#allocation8 + $0x1a8] sm:$0xff]
        %v466 = vld [vmem:[#allocation8 + $0x1b0] sm:$0xff]
        %v467 = vld [vmem:[#allocation8 + $0x1b8] sm:$0xff]
        %v468 = vld [vmem:[#allocation8 + $0x1c0] sm:$0xff]
        %v469 = vld [vmem:[#allocation8 + $0x1c8] sm:$0xff]
        %v470 = vld [vmem:[#allocation8 + $0x1d0] sm:$0xff]
        %v471 = vld [vmem:[#allocation8 + $0x1d8] sm:$0xff]
        %v472 = vld [vmem:[#allocation8 + $0x1e0] sm:$0xff]
        %v473 = vld [vmem:[#allocation8 + $0x1e8] sm:$0xff]
        %v474 = vld [vmem:[#allocation8 + $0x1f0] sm:$0xff]
        %v475 = vld [vmem:[#allocation8 + $0x1f8] sm:$0xff]
        %476 = vmatprep.subr.mxu0 %v413
        %477 = vmatpush1.msra.mxu0 %v412
        %478 = vmatprep.subr.mxu0 %v417
        %479 = vmatpush1.msra.mxu0 %v416
        %480 = vmatprep.subr.mxu0 %v421
        %481 = vmatpush1.msra.mxu0 %v420
        %482 = vmatprep.subr.mxu0 %v425
        %483 = vmatpush1.msra.mxu0 %v424
        %484 = vmatprep.subr.mxu0 %v429
        %485 = vmatpush1.msra.mxu0 %v428
        %486 = vmatprep.subr.mxu0 %v433
        %487 = vmatpush1.msra.mxu0 %v432
        %488 = vmatprep.subr.mxu0 %v437
        %489 = vmatpush1.msra.mxu0 %v436
        %490 = vmatprep.subr.mxu0 %v441
        %491 = vmatpush1.msra.mxu0 %v440
        %492 = vmatprep.subr.mxu0 %v445
        %493 = vmatpush1.msra.mxu0 %v444
        %494 = vmatprep.subr.mxu0 %v449
        %495 = vmatpush1.msra.mxu0 %v448
        %496 = vmatprep.subr.mxu0 %v453
        %497 = vmatpush1.msra.mxu0 %v452
        %498 = vmatprep.subr.mxu0 %v457
        %499 = vmatpush1.msra.mxu0 %v456
        %500 = vmatprep.subr.mxu0 %v461
        %501 = vmatpush1.msra.mxu0 %v460
        %502 = vmatprep.subr.mxu0 %v465
        %503 = vmatpush1.msra.mxu0 %v464
        %504 = vmatprep.subr.mxu0 %v469
        %505 = vmatpush1.msra.mxu0 %v468
        %506 = vmatprep.subr.mxu0 %v473
        %507 = vmatpush1.msra.mxu0 %v472
        %508 = vmatprep.subr.mxu0 0.0
        %509 = vmatpush1.msra.mxu0 0.0
        %510 = vmatprep.subr.mxu0 0.0
        %511 = vmatpush1.msra.mxu0 0.0
        %512 = vmatprep.subr.mxu0 0.0
        %513 = vmatpush1.msra.mxu0 0.0
        %514 = vmatprep.subr.mxu0 0.0
        %515 = vmatpush1.msra.mxu0 0.0
        %516 = vmatprep.subr.mxu0 0.0
        %517 = vmatpush1.msra.mxu0 0.0
        %518 = vmatprep.subr.mxu0 0.0
        %519 = vmatpush1.msra.mxu0 0.0
        %520 = vmatprep.subr.mxu0 0.0
        %521 = vmatpush1.msra.mxu0 0.0
        %522 = vmatprep.subr.mxu0 0.0
        %523 = vmatpush1.msra.mxu0 0.0
        %524 = vmatprep.subr.mxu0 0.0
        %525 = vmatpush1.msra.mxu0 0.0
        %526 = vmatprep.subr.mxu0 0.0
        %527 = vmatpush1.msra.mxu0 0.0
        %528 = vmatprep.subr.mxu0 0.0
        %529 = vmatpush1.msra.mxu0 0.0
        %530 = vmatprep.subr.mxu0 0.0
        %531 = vmatpush1.msra.mxu0 0.0
        %532 = vmatprep.subr.mxu0 0.0
        %533 = vmatpush1.msra.mxu0 0.0
        %534 = vmatprep.subr.mxu0 0.0
        %535 = vmatpush1.msra.mxu0 0.0
        %536 = vmatprep.subr.mxu0 0.0
        %537 = vmatpush1.msra.mxu0 0.0
        %538 = vmatprep.subr.mxu0 0.0
        %539 = vmatpush1.msra.mxu0 0.0
        %540 = vmatprep.mubr.f32.mxu0 0.0
        %541 = vmatmul.mubr.f32.gmra.mrb[0].mxu0 %v411
        %v542 = vpop.f32.mrb[0].mxu0
        %v543 = vadd.f32 0.0, %v542
        %v544 = vpop.f32.mrb[0].mxu0
        %v545 = vadd.f32 0.0, %v544
        %546 = vdwg.mxu0
        %547 = vmatprep.subr.mxu0 %v415
        %548 = vmatpush1.msra.mxu0 %v414
        %549 = vmatprep.subr.mxu0 %v419
        %550 = vmatpush1.msra.mxu0 %v418
        %551 = vmatprep.subr.mxu0 %v423
        %552 = vmatpush1.msra.mxu0 %v422
        %553 = vmatprep.subr.mxu0 %v427
        %554 = vmatpush1.msra.mxu0 %v426
        %555 = vmatprep.subr.mxu0 %v431
        %556 = vmatpush1.msra.mxu0 %v430
        %557 = vmatprep.subr.mxu0 %v435
        %558 = vmatpush1.msra.mxu0 %v434
        %559 = vmatprep.subr.mxu0 %v439
        %560 = vmatpush1.msra.mxu0 %v438
        %561 = vmatprep.subr.mxu0 %v443
        %562 = vmatpush1.msra.mxu0 %v442
        %563 = vmatprep.subr.mxu0 %v447
        %564 = vmatpush1.msra.mxu0 %v446
        %565 = vmatprep.subr.mxu0 %v451
        %566 = vmatpush1.msra.mxu0 %v450
        %567 = vmatprep.subr.mxu0 %v455
        %568 = vmatpush1.msra.mxu0 %v454
        %569 = vmatprep.subr.mxu0 %v459
        %570 = vmatpush1.msra.mxu0 %v458
        %571 = vmatprep.subr.mxu0 %v463
        %572 = vmatpush1.msra.mxu0 %v462
        %573 = vmatprep.subr.mxu0 %v467
        %574 = vmatpush1.msra.mxu0 %v466
        %575 = vmatprep.subr.mxu0 %v471
        %576 = vmatpush1.msra.mxu0 %v470
        %577 = vmatprep.subr.mxu0 %v475
        %578 = vmatpush1.msra.mxu0 %v474
        %579 = vmatprep.subr.mxu0 0.0
        %580 = vmatpush1.msra.mxu0 0.0
        %581 = vmatprep.subr.mxu0 0.0
        %582 = vmatpush1.msra.mxu0 0.0
        %583 = vmatprep.subr.mxu0 0.0
        %584 = vmatpush1.msra.mxu0 0.0
        %585 = vmatprep.subr.mxu0 0.0
        %586 = vmatpush1.msra.mxu0 0.0
        %587 = vmatprep.subr.mxu0 0.0
        %588 = vmatpush1.msra.mxu0 0.0
        %589 = vmatprep.subr.mxu0 0.0
        %590 = vmatpush1.msra.mxu0 0.0
        %591 = vmatprep.subr.mxu0 0.0
        %592 = vmatpush1.msra.mxu0 0.0
        %593 = vmatprep.subr.mxu0 0.0
        %594 = vmatpush1.msra.mxu0 0.0
        %595 = vmatprep.subr.mxu0 0.0
        %596 = vmatpush1.msra.mxu0 0.0
        %597 = vmatprep.subr.mxu0 0.0
        %598 = vmatpush1.msra.mxu0 0.0
        %599 = vmatprep.subr.mxu0 0.0
        %600 = vmatpush1.msra.mxu0 0.0
        %601 = vmatprep.subr.mxu0 0.0
        %602 = vmatpush1.msra.mxu0 0.0
        %603 = vmatprep.subr.mxu0 0.0
        %604 = vmatpush1.msra.mxu0 0.0
        %605 = vmatprep.subr.mxu0 0.0
        %606 = vmatpush1.msra.mxu0 0.0
        %607 = vmatprep.subr.mxu0 0.0
        %608 = vmatpush1.msra.mxu0 0.0
        %609 = vmatprep.subr.mxu0 0.0
        %610 = vmatpush1.msra.mxu0 0.0
        %611 = vmatprep.mubr.f32.mxu0 0.0
        %612 = vmatmul.mubr.f32.gmra.mrb[0].mxu0 %v411
        %v613 = vpop.f32.mrb[0].mxu0
        %v614 = vadd.f32 0.0, %v613
        %v615 = vpop.f32.mrb[0].mxu0
        %v616 = vadd.f32 0.0, %v615
        %617 = vdwg.mxu0
        %s618 = sld [smem:[#allocation2]]
        %s619 = sadd.f32 %s618, 1.0
        %v620 = vld [vmem:[%s276] sm:$0xff]
        %v621 = vstv %s619
        %v622 = vmul.f32 %v621, %v620
        %v623 = vstv %s618
        %v624 = vmul.f32 %v623, %v543
        %v625 = vmul.f32 %v623, %v545
        %v628 = vcombine.low %v624, %v625
        %v630 = vsub.f32 %v622, %v628
        %631 = vst [vmem:[%s322] sm:$0xff] %v630
        %s632 = scalar_lea.vmem %s276, 8 [#allocation3]
        %v633 = vld [vmem:[%s632] sm:$0xff]
        %v634 = vmul.f32 %v621, %v633
        %v635 = vmul.f32 %v623, %v614
        %v636 = vmul.f32 %v623, %v616
        %v639 = vcombine.low %v635, %v636
        %v641 = vsub.f32 %v634, %v639
        %s642 = scalar_lea.vmem %s322, 8 [#allocation9]
        %643 = vst [vmem:[%s642] sm:$0xff] %v641
        %s644 = sand.u32 %s171, 1
        %s645 = scalar_lea.sflag [#allocation5], %s644
        %s646 = sand.u32 %s171, 1
        %s647 = smul.addr %s646, 16
        %s648 = scalar_lea.vmem [#allocation9], %s647
        // Predicated region
        $region57: #{tpu_custom_call.1} parent=43 // pred_check
          %p649 = pneg %p181
        $region58: #{tpu_custom_call.1} parent=43 // pred_check_branch
          %651 = sbr.rel (%p649) target = $region60
        $region59: #{tpu_custom_call.1} parent=43 // pred_region
          %s652 = smul.u32 2, %s27
          %s654 = ssub.s32 256, 256
          %655 = vsyncadd %s645, %s654
          %s656 = smul.addr %s652, 2
          %s657 = smul.addr %s656, 64
          %s658 = scalar_lea.hbm %s6, %s657
          %s659 = sshll.u32 %s648, 4
          %s660 = int_to_ptr.vmem [resolvable:$true] %s659
          %665 = dma.vmem_to_hbm [thread:$0]  %s660, 256, %s658, %s645, 128, 128, 8
        $region60: #{tpu_custom_call.1} parent=43 // pred_fallthru
          _
      $region44: #{tpu_custom_call.1} parent=5 // pred_fallthru
        _
      %p666 = scmp.le.s32.totalorder 2, %s22
      // Predicated region
      $region61: #{tpu_custom_call.1} parent=5 // pred_check
        %p667 = pneg %p666
      $region62: #{tpu_custom_call.1} parent=5 // pred_check_branch
        %669 = sbr.rel (%p667) target = $region64
      $region63: #{tpu_custom_call.1} parent=5 // pred_region
        %s670 = ssub.s32 %s22, 2
        // Predicated region
        $region65: #{tpu_custom_call.1} parent=63 // pred_check
          %p671 = pneg %p187
        $region66: #{tpu_custom_call.1} parent=63 // pred_check_branch
          %673 = sbr.rel (%p671) target = $region68
        $region67: #{tpu_custom_call.1} parent=63 // pred_region
          %s674 = sand.u32 %s172, 1
          %s675 = scalar_lea.sflag [#allocation5], %s674
          %s676 = sand.u32 %s172, 1
          %s677 = smul.addr %s676, 16
          %s678 = scalar_lea.vmem [#allocation9], %s677
          %679 = dma.done %s675, 256
        $region68: #{tpu_custom_call.1} parent=63 // pred_fallthru
          _
      $region64: #{tpu_custom_call.1} parent=5 // pred_fallthru
        _
    $region6: #{tpu_custom_call.1} parent=1 // loop_footer
      %s26 = sadd.s32 1, %s22
    $region7: #{tpu_custom_call.1} parent=1 // loop_footer_branch
      %21 = sbr.rel target = $region3
    $region8: #{tpu_custom_call.1} parent=1 // loop_exit
      _
    %680 = vsyncpa [#allocation4], 1
    %s681 = scalar_lea.sflag [#allocation4], 1
    %682 = vsyncpa %s681, 1
    %683 = vsyncpa [#allocation7], 1
    %s684 = scalar_lea.sflag [#allocation7], 1
    %685 = vsyncpa %s684, 1
    %686 = vsyncpa [#allocation5], 1
    %s687 = scalar_lea.sflag [#allocation5], 1
    %688 = vsyncpa %s687, 1

</llo_original>
